<compile_context>
chip_gen: v7x
topology: tpu7x:2x2x1
jax: 0.10.0
libtpu: 0.0.40
codegen_flags: <defaults>
</compile_context>

<pallas_src>
import jax
import jax.numpy as jnp
from jax.experimental import pallas as pl
from jax.experimental.pallas import tpu as pltpu

_MIB = 1024 * 1024


# ----------------------------------------------------------------------------- helpers
def _round_up(x, m):
    return ((x + m - 1) // m) * m


def _sublane_multiple(dtype):
    itemsize = jnp.dtype(dtype).itemsize
    if itemsize >= 4:
        return 8
    if itemsize == 2:
        return 16
    return 32


def _largest_divisor_tile(total, preferred, multiple=128):
    """Largest t <= preferred with t % multiple == 0 and total % t == 0."""
    assert total % multiple == 0, f"{total} must be a multiple of {multiple}"
    t = max(multiple, min(preferred, total))
    t = (t // multiple) * multiple
    while t > multiple and total % t != 0:
        t -= multiple
    return t


def _tpu_generation():
    try:
        kind = jax.devices()[0].device_kind.lower()
    except Exception:
        kind = ""
    if "v7" in kind or "7x" in kind:
        return "v7x"
    if "v6" in kind:
        return "v6e"
    if "v5e" in kind or "v5 lite" in kind or "v5lite" in kind:
        return "v5e"
    return "unknown"


def _vmem_capacity_bytes(gen):
    try:
        cap = int(pltpu.get_tpu_info().vmem_capacity_bytes)
        if cap > 0:
            return cap
    except Exception:
        pass
    if gen in ("v5e", "v6e"):
        return 128 * _MIB
    return 64 * _MIB  # conservative (v7x physical)


def _cores_per_chip():
    try:
        dev = jax.devices()[0]
        for attr in ("num_cores", "core_count", "num_tensorcores"):
            v = getattr(dev, attr, None)
            if isinstance(v, int) and v > 0:
                return v
    except Exception:
        pass
    return 1


# ----------------------------------------------------------------------------- kernel
def _qwen_mlp_kernel(x_ref, w_gate_ref, w_up_ref, w_down_ref, o_ref, acc_ref):
    # x_ref      : (tm, H)   token tile (constant across the reduction axis)
    # w_gate_ref : (H, ti)   gate columns for this reduction step
    # w_up_ref   : (H, ti)   up   columns for this reduction step
    # w_down_ref : (ti, tn)  down rows (tn = H / h_split columns) for this step
    # o_ref      : (tm, tn)  output tile, written on the last reduction step
    # acc_ref    : (tm, tn)  f32 VMEM accumulator
    j = pl.program_id(2)

    @pl.when(j == 0)
    def _init():
        acc_ref[...] = jnp.zeros_like(acc_ref)

    x = x_ref[...]
    # Matmuls in the input dtype (bf16 at real sizes), f32 accumulation on MXU.
    g = jnp.dot(x, w_gate_ref[...], preferred_element_type=jnp.float32)
    u = jnp.dot(x, w_up_ref[...], preferred_element_type=jnp.float32)
    # SiLU via exp + approx reciprocal: the divide goes to the EUP slot instead
    # of Newton-iteration vmuls on the VALU.
    silu_g = g * pl.reciprocal(1.0 + jnp.exp(-g), approx=True)
    h = (silu_g * u).astype(w_down_ref.dtype)
    acc_ref[...] += jnp.dot(h, w_down_ref[...], preferred_element_type=jnp.float32)

    @pl.when(j == pl.num_programs(2) - 1)
    def _finalize():
        o_ref[...] = acc_ref[...].astype(o_ref.dtype)


# ----------------------------------------------------------------------------- wrapper
def qwen_mlp(x, w_gate_up, w_down, *, token_tile=None, i_tile=None, h_split=None):
    """QWenMLP forward.

    x         : (T, H)
    w_gate_up : (H, 2*I)  gate columns first, up columns second
    w_down    : (I, H)
    returns   : (T, H)

    token_tile / i_tile / h_split default to generation-aware choices.
    """
    T, H = x.shape
    two_I = w_gate_up.shape[1]
    I = two_I // 2
    assert two_I == 2 * I and w_gate_up.shape == (H, two_I)
    assert w_down.shape == (I, H)

    dt_x = x.dtype.itemsize
    dt_w = w_gate_up.dtype.itemsize
    sub = _sublane_multiple(x.dtype)

    # Pad the intermediate dim to a multiple of 128 if needed. Zero gate/up
    # columns give silu(0)*0 = 0, so the padded down rows contribute nothing.
    if I % 128 != 0:
        I_pad = _round_up(I, 128)
        gate = jnp.pad(w_gate_up[:, :I], ((0, 0), (0, I_pad - I)))
        up = jnp.pad(w_gate_up[:, I:], ((0, 0), (0, I_pad - I)))
        w_gate_up = jnp.concatenate([gate, up], axis=1)
        w_down = jnp.pad(w_down, ((0, I_pad - I), (0, 0)))
        I = I_pad

    gen = _tpu_generation()
    vmem_cap = _vmem_capacity_bytes(gen)
    # Leave compiler-internal headroom below physical VMEM (~112 MiB usable on
    # 128 MiB parts, ~52 MiB on 64 MiB parts).
    vmem_budget = vmem_cap - max(vmem_cap // 8, 12 * _MIB)

    # Prefill token tile must cross the compute/HBM roofline (peak_flops/HBM_BW
    # ~ 240 on v5e, ~680 on v6e, ~320 on v7x) since weights re-stream per tile.
    if token_tile is None:
        token_tile = {"v5e": 256, "v6e": 768, "v7x": 512}.get(gen, 256)
    if i_tile is None:
        i_tile = {"v5e": 1024, "v6e": 1024, "v7x": 512}.get(gen, 512)

    # H-split (second "parallel" grid axis): keeps both TensorCores busy on a
    # 2-TC chip (v7x) when there is only a single token tile (decode), and
    # halves the per-core accumulator / down-tile footprint.
    single_token_tile = _round_up(max(T, 1), sub) <= token_tile
    if h_split is None:
        h_split = 2 if (_cores_per_chip() >= 2 and single_token_tile
                        and H % 256 == 0) else 1
    if h_split > 1:
        assert H % h_split == 0 and (H // h_split) % 128 == 0, \
            "H/h_split must be a multiple of 128"
    tn = H // h_split

    # --- budget-driven tile selection -------------------------------------
    def vmem_est(tm_, ti_, wbuf_):
        return (2 * tm_ * H * dt_x                     # x tile (double-buffered)
                + wbuf_ * 2 * H * ti_ * dt_w           # gate + up weight tiles
                + wbuf_ * ti_ * tn * dt_w              # down weight tile
                + 2 * tm_ * tn * dt_x                  # output tile
                + tm_ * tn * 4                         # f32 accumulator scratch
                + 2 * tm_ * ti_ * 4 + tm_ * ti_ * dt_w)  # g/u/h temporaries

    tm = max(sub, min(token_tile, _round_up(max(T, 1), sub)))
    tm = _round_up(tm, sub)
    ti = _largest_divisor_tile(I, i_tile)
    wbuf = 2
    while vmem_est(tm, ti, wbuf) > vmem_budget and ti > 128:
        ti = _largest_divisor_tile(I, ti - 128)
    while vmem_est(tm, ti, wbuf) > vmem_budget and tm > sub:
        tm = max(sub, _round_up(tm // 2, sub))
    # A third weight buffer hides DMA jitter on 128 MiB parts when it fits.
    if vmem_cap >= 100 * _MIB and vmem_est(tm, ti, 3) <= vmem_budget:
        wbuf = 3

    est = vmem_est(tm, ti, wbuf)
    vmem_limit = int(max(min(vmem_budget, est + 12 * _MIB), 16 * _MIB))

    # --- token padding -----------------------------------------------------
    T_pad = _round_up(max(T, 1), tm)
    if T_pad != T:
        x = jnp.pad(x, ((0, T_pad - T), (0, 0)))

    n_t = T_pad // tm
    n_i = I // ti
    grid = (n_t, h_split, n_i)

    # --- scheduling hints --------------------------------------------------
    flops = (4 * h_split + 2) * T_pad * H * I
    bytes_accessed = (2 * H * I * dt_w * n_t * h_split   # gate+up, per (tile, split)
                      + I * H * dt_w * n_t               # down, per token tile
                      + T_pad * H * dt_x                 # x read
                      + T_pad * H * dt_x)                # out write
    cost = pl.CostEstimate(flops=int(flops),
                           transcendentals=int(T_pad * I),
                           bytes_accessed=int(bytes_accessed))

    # --- BlockSpecs ----------------------------------------------------------
    def w_spec(shape, index_map):
        if wbuf > 2 and hasattr(pl, "Buffered"):
            try:
                return pl.BlockSpec(shape, index_map, pipeline_mode=pl.Buffered(wbuf))
            except TypeError:
                pass
        return pl.BlockSpec(shape, index_map)

    out = pl.pallas_call(
        _qwen_mlp_kernel,
        out_shape=jax.ShapeDtypeStruct((T_pad, H), x.dtype),
        grid_spec=pltpu.PrefetchScalarGridSpec(
            num_scalar_prefetch=0,
            grid=grid,
            in_specs=[
                pl.BlockSpec((tm, H), lambda i, h, j: (i, 0)),      # x tile
                w_spec((H, ti), lambda i, h, j: (0, j)),            # gate columns
                w_spec((H, ti), lambda i, h, j: (0, j + n_i)),      # up columns
                w_spec((ti, tn), lambda i, h, j: (j, h)),           # down tile
            ],
            out_specs=pl.BlockSpec((tm, tn), lambda i, h, j: (i, h)),
            scratch_shapes=[pltpu.VMEM((tm, tn), jnp.float32)],
        ),
        compiler_params=pltpu.CompilerParams(
            dimension_semantics=("parallel", "parallel", "arbitrary"),
            vmem_limit_bytes=vmem_limit),
        cost_estimate=cost,
    )(x, w_gate_up, w_gate_up, w_down)

    return out[:T] if T_pad != T else out


# ----------------------------------------------------------------------------- reference
def qwen_mlp_reference(x, w_gate_up, w_down):
    I = w_down.shape[0]
    gate_up = jnp.dot(x.astype(jnp.float32), w_gate_up.astype(jnp.float32))
    gate, up = gate_up[:, :I], gate_up[:, I:]
    h = gate * jax.nn.sigmoid(gate) * up
    return jnp.dot(h, w_down.astype(jnp.float32)).astype(x.dtype)


# ----------------------------------------------------------------------------- test
if __name__ == "__main__":
    key = jax.random.PRNGKey(0)

    def make_inputs(T, H, I, dtype):
        k = jax.random.fold_in(key, T * 1009 + H * 31 + I)
        kx, kg, ku, kd = jax.random.split(k, 4)
        x = jax.random.normal(kx, (T, H), dtype=jnp.float32).astype(dtype)
        wg = (jax.random.normal(kg, (H, I), dtype=jnp.float32) * 0.05).astype(dtype)
        wu = (jax.random.normal(ku, (H, I), dtype=jnp.float32) * 0.05).astype(dtype)
        wd = (jax.random.normal(kd, (I, H), dtype=jnp.float32) * 0.05).astype(dtype)
        return x, jnp.concatenate([wg, wu], axis=1), wd

    def check(T, H, I, dtype, tol, **kw):
        x, wgu, wd = make_inputs(T, H, I, dtype)
        out = jax.block_until_ready(qwen_mlp(x, wgu, wd, **kw))
        ref = qwen_mlp_reference(x, wgu, wd)
        assert out.shape == (T, H), (out.shape, (T, H))
        err = float(jnp.max(jnp.abs(out.astype(jnp.float32) - ref.astype(jnp.float32))))
        assert err < tol, f"mismatch: T={T} H={H} I={I} {dtype} max_err={err}"

    # 1) multi-step reduction over I (3 steps with i_tile=128), f32 path
    check(8, 128, 384, jnp.float32, 1e-2, token_tile=256, i_tile=128)
    # 2) ragged token count + fully automatic (generation-aware) tiling
    check(13, 128, 256, jnp.float32, 1e-2)
    # 3) bf16 activations/weights (16-row sublane rounding, bf16 MXU path)
    check(8, 128, 256, jnp.bfloat16, 5e-2)
    # 4) explicit H-split parallel axis (v7x decode path)
    check(8, 256, 256, jnp.float32, 1e-2, h_split=2, i_tile=128)
    # 5) intermediate dim not a multiple of 128 (internal padding path)
    check(5, 128, 320, jnp.float32, 1e-2)

    print("KERNEL_OK")
</pallas_src>

<mosaic_0001>
module attributes {stable_mosaic.version = 11 : i64} {
  func.func @_qwen_mlp_kernel(%arg0: i32, %arg1: i32, %arg2: i32, %arg3: memref<8x128xf32, #tpu.memory_space<vmem>>, %arg4: memref<128x128xf32, #tpu.memory_space<vmem>>, %arg5: memref<128x128xf32, #tpu.memory_space<vmem>>, %arg6: memref<128x128xf32, #tpu.memory_space<vmem>>, %arg7: memref<8x128xf32, #tpu.memory_space<vmem>>, %arg8: memref<8x128xf32, #tpu.memory_space<vmem>>) attributes {dimension_semantics = [#tpu.dimension_semantics<parallel>, #tpu.dimension_semantics<parallel>, #tpu.dimension_semantics<arbitrary>], iteration_bounds = array<i64: 1, 1, 3>, scalar_prefetch = 0 : i64, scratch_operands = 1 : i64, tpu.core_type = #tpu.core_type<tc>, window_params = [{transform_indices = @transform_0, window_bounds = array<i64: 8, 128>}, {transform_indices = @transform_1, window_bounds = array<i64: 128, 128>}, {transform_indices = @transform_2, window_bounds = array<i64: 128, 128>}, {transform_indices = @transform_3, window_bounds = array<i64: 128, 128>}, {transform_indices = @transform_4, window_bounds = array<i64: 8, 128>}]} {
    %c0_i32 = arith.constant 0 : i32
    %0 = arith.cmpi eq, %arg2, %c0_i32 : i32
    %1 = arith.extui %0 : i1 to i32
    %c0_i32_0 = arith.constant 0 : i32
    %2 = arith.cmpi ne, %1, %c0_i32_0 : i32
    scf.if %2 {
      %cst_17 = arith.constant 0.000000e+00 : f32
      %24 = vector.broadcast %cst_17 : f32 to vector<8x128xf32>
      %c0_18 = arith.constant 0 : index
      %c0_19 = arith.constant 0 : index
      %25 = vector.load %arg8[%c0_18, %c0_19] : memref<8x128xf32, #tpu.memory_space<vmem>>, vector<8x128xf32>
      tpu.vector_store %arg8[%c0_18, %c0_19], %24 {strides = array<i32>} : memref<8x128xf32, #tpu.memory_space<vmem>>, vector<8x128xf32>,
    } else {
    }
    %c0 = arith.constant 0 : index
    %c0_1 = arith.constant 0 : index
    %3 = vector.load %arg3[%c0, %c0_1] : memref<8x128xf32, #tpu.memory_space<vmem>>, vector<8x128xf32>
    %c0_2 = arith.constant 0 : index
    %c0_3 = arith.constant 0 : index
    %4 = vector.load %arg4[%c0_2, %c0_3] : memref<128x128xf32, #tpu.memory_space<vmem>>, vector<128x128xf32>
    %cst = arith.constant dense<0.000000e+00> : vector<8x128xf32>
    %5 = tpu.matmul %3, %4, %cst {dimension_numbers = #tpu.dot_dimension_numbers<[1], [0], [0], [1], [0, 0, 1, 1], [], []>} : vector<8x128xf32>, vector<128x128xf32>, vector<8x128xf32> -> vector<8x128xf32>
    %c0_4 = arith.constant 0 : index
    %c0_5 = arith.constant 0 : index
    %6 = vector.load %arg5[%c0_4, %c0_5] : memref<128x128xf32, #tpu.memory_space<vmem>>, vector<128x128xf32>
    %cst_6 = arith.constant dense<0.000000e+00> : vector<8x128xf32>
    %7 = tpu.matmul %3, %6, %cst_6 {dimension_numbers = #tpu.dot_dimension_numbers<[1], [0], [0], [1], [0, 0, 1, 1], [], []>} : vector<8x128xf32>, vector<128x128xf32>, vector<8x128xf32> -> vector<8x128xf32>
    %cst_7 = arith.constant 0.000000e+00 : f32
    %8 = vector.broadcast %cst_7 : f32 to vector<8x128xf32>
    %9 = arith.subf %8, %5 : vector<8x128xf32>
    %10 = math.exp %9 : vector<8x128xf32>
    %cst_8 = arith.constant 1.000000e+00 : f32
    %11 = vector.broadcast %cst_8 : f32 to vector<8x128xf32>
    %12 = arith.addf %11, %10 : vector<8x128xf32>
    %13 = tpu.reciprocal %12 {approx = true} : vector<8x128xf32> -> vector<8x128xf32>
    %14 = arith.mulf %5, %13 : vector<8x128xf32>
    %15 = arith.mulf %14, %7 : vector<8x128xf32>
    %c0_9 = arith.constant 0 : index
    %c0_10 = arith.constant 0 : index
    %16 = vector.load %arg8[%c0_9, %c0_10] : memref<8x128xf32, #tpu.memory_space<vmem>>, vector<8x128xf32>
    %c0_11 = arith.constant 0 : index
    %c0_12 = arith.constant 0 : index
    %17 = vector.load %arg6[%c0_11, %c0_12] : memref<128x128xf32, #tpu.memory_space<vmem>>, vector<128x128xf32>
    %cst_13 = arith.constant dense<0.000000e+00> : vector<8x128xf32>
    %18 = tpu.matmul %15, %17, %cst_13 {dimension_numbers = #tpu.dot_dimension_numbers<[1], [0], [0], [1], [0, 0, 1, 1], [], []>} : vector<8x128xf32>, vector<128x128xf32>, vector<8x128xf32> -> vector<8x128xf32>
    %19 = arith.addf %16, %18 : vector<8x128xf32>
    %c0_14 = arith.constant 0 : index
    %c0_15 = arith.constant 0 : index
    %20 = vector.load %arg8[%c0_14, %c0_15] : memref<8x128xf32, #tpu.memory_space<vmem>>, vector<8x128xf32>
    tpu.vector_store %arg8[%c0_14, %c0_15], %19 {strides = array<i32>} : memref<8x128xf32, #tpu.memory_space<vmem>>, vector<8x128xf32>,
    %c2_i32 = arith.constant 2 : i32
    %21 = arith.cmpi eq, %arg2, %c2_i32 : i32
    %22 = arith.extui %21 : i1 to i32
    %c0_i32_16 = arith.constant 0 : i32
    %23 = arith.cmpi ne, %22, %c0_i32_16 : i32
    scf.if %23 {
      %c0_17 = arith.constant 0 : index
      %c0_18 = arith.constant 0 : index
      %24 = vector.load %arg8[%c0_17, %c0_18] : memref<8x128xf32, #tpu.memory_space<vmem>>, vector<8x128xf32>
      %c0_19 = arith.constant 0 : index
      %c0_20 = arith.constant 0 : index
      %25 = vector.load %arg7[%c0_19, %c0_20] : memref<8x128xf32, #tpu.memory_space<vmem>>, vector<8x128xf32>
      tpu.vector_store %arg7[%c0_19, %c0_20], %24 {strides = array<i32>} : memref<8x128xf32, #tpu.memory_space<vmem>>, vector<8x128xf32>,
    } else {
    }
    return
  }
  func.func @transform_0(%arg0: i32, %arg1: i32, %arg2: i32) -> (i32, i32) {
    %c0_i32 = arith.constant 0 : i32
    %c0_i32_0 = arith.constant 0 : i32
    return %arg0, %c0_i32 : i32, i32
  }
  func.func @transform_1(%arg0: i32, %arg1: i32, %arg2: i32) -> (i32, i32) {
    %c0_i32 = arith.constant 0 : i32
    %c0_i32_0 = arith.constant 0 : i32
    return %c0_i32, %arg2 : i32, i32
  }
  func.func @transform_2(%arg0: i32, %arg1: i32, %arg2: i32) -> (i32, i32) {
    %c3_i32 = arith.constant 3 : i32
    %0 = arith.addi %arg2, %c3_i32 : i32
    %c0_i32 = arith.constant 0 : i32
    %c0_i32_0 = arith.constant 0 : i32
    return %c0_i32, %0 : i32, i32
  }
  func.func @transform_3(%arg0: i32, %arg1: i32, %arg2: i32) -> (i32, i32) {
    %c0_i32 = arith.constant 0 : i32
    return %arg2, %arg1 : i32, i32
  }
  func.func @transform_4(%arg0: i32, %arg1: i32, %arg2: i32) -> (i32, i32) {
    %c0_i32 = arith.constant 0 : i32
    return %arg0, %arg1 : i32, i32
  }
}

</mosaic_0001>

<llo_original>
// kernel: tpu_custom_call.1
$region0: #{tpu_custom_call.1}
  #allocation0 [shape = 'u32[]', space=smem, size = 0x4, offset = 0x4, fixed_abs, tag = 'smem constant byte address 0x4 - core index']
  #allocation1 [shape = 'u32[144,128]{1,0:T(1,128)}', space=vmem, size = 0x12000, scoped, tag = 'internal scratch']
  #allocation2 [shape = 'f32[8,128]{1,0:T(8,128)}', space=vmem, size = 0x1000, scoped, tag = 'scratch operand']
  %s0 = inlined_call_operand.hbm [shape: f32[8,128], index: 0, kind: input, shape index: {}]
  %s1 = inlined_call_operand.hbm [shape: f32[128,768], index: 1, kind: input, shape index: {}]
  %s2 = inlined_call_operand.hbm [shape: f32[128,768], index: 2, kind: input, shape index: {}]
  %s3 = inlined_call_operand.hbm [shape: f32[384,128], index: 3, kind: input, shape index: {}]
  %s4 = inlined_call_operand.hbm [shape: f32[8,128], index: 4, kind: output, shape index: {}]
  %s5 = sld [smem:[#allocation0]]
  $region73: #{tpu_custom_call.1} parent=0
    _
  %s7 = ssub.s32 1, %s5
  %s8 = scalar_select 0, %s7, %s5
  $region1: #{tpu_custom_call.1} parent=0
    #allocation3 [shape = 'u8[4096]{0}', space=vmem, size = 0x1000, scoped, tag = 'input window, operand 0, single buffered']
    #allocation4 [shape = 's32[2]{0}', space=sflag, size = 0x8, scoped, tag = 'scoped memory for tpu_custom_call.1']
    #allocation5 [shape = 's32[2]{0}', space=sflag, size = 0x8, scoped, tag = 'scoped memory for tpu_custom_call.1']
    #allocation6 [shape = 'u8[131072]{0}', space=vmem, size = 0x20000, scoped, tag = 'input window, operand 1']
    #allocation7 [shape = 's32[2]{0}', space=sflag, size = 0x8, scoped, tag = 'scoped memory for tpu_custom_call.1']
    #allocation8 [shape = 'u8[131072]{0}', space=vmem, size = 0x20000, scoped, tag = 'input window, operand 2']
    #allocation9 [shape = 'u8[131072]{0}', space=vmem, size = 0x20000, scoped, tag = 'input window, operand 3']
    #allocation10 [shape = 's32[2]{0}', space=sflag, size = 0x8, scoped, tag = 'scoped memory for tpu_custom_call.1']
    #allocation11 [shape = 'u8[4096]{0}', space=vmem, size = 0x1000, scoped, tag = 'output window, operand 0, single buffered']
    %9 = vsyncpa [#allocation4], 0
    %10 = vsyncpa [#allocation7], 0
    %s11 = scalar_lea.sflag [#allocation7], 1
    %12 = vsyncpa %s11, 0
    %13 = vsyncpa [#allocation10], 0
    %s14 = scalar_lea.sflag [#allocation10], 1
    %15 = vsyncpa %s14, 0
    %16 = vsyncpa [#allocation5], 0
    loop: start=0, step=1, limit=5
    $region2: #{tpu_custom_call.1} parent=1 // loop_pre_header
      _
    $region3: #{tpu_custom_call.1} parent=1 // loop_header
      %s18 = sphi 0, %s22
      %p19 = scmp.ge.s32.totalorder %s18, 5
      %s25 = sphi 0, %s44
      %s26 = sphi 0, %s40
      %s27 = sphi 0, %s36
      %s28 = sphi 0, %s25
      %s29 = sphi 0, %s26
      %s30 = sphi 0, %s27
      %s31 = sphi 0, %s28
      %s32 = sphi 0, %s29
      %s33 = sphi 0, %s30
      %s47 = sphi 0, %s49
      %s50 = sphi 0, %s47
      %s51 = sphi 0, %s50
      %s67 = sphi 0, %s51
      %s73 = sphi 0, %s75
      %s76 = sphi 0, %s73
      %s77 = sphi 0, %s76
      %s93 = sphi 0, %s77
      %s101 = sphi 0, %s103
      %s104 = sphi 0, %s101
      %s105 = sphi 0, %s104
      %s121 = sphi 0, %s105
      %s129 = sphi 0, %s131
      %s132 = sphi 0, %s129
      %s133 = sphi 0, %s132
      %s149 = sphi 0, %s133
      %s157 = sphi 0, %s159
      %s160 = sphi 0, %s157
      %s161 = sphi 0, %s160
      %s177 = sphi 0, %s161
    $region4: #{tpu_custom_call.1} parent=1 // loop_header_branch
      %21 = sbr.rel (%p19) target = $region8
    $region5: #{tpu_custom_call.1} parent=1 // loop_body
      %s23 = ssub.s32 %s18, 1
      %s24 = ssub.s32 %s18, 2
      %s34 = sadd.s32 1, %s27
      %p35 = scmp.ge.s32.totalorder %s34, 3
      %s36 = scalar_select %p35, 0, %s34
      %s37 = sadd.s32 1, %s26
      %s38 = scalar_select %p35, %s37, %s26
      %p39 = scmp.ge.s32.totalorder %s38, 1
      %s40 = scalar_select %p39, 0, %s38
      %s41 = sadd.s32 1, %s25
      %s42 = scalar_select %p39, %s41, %s25
      %p43 = scmp.ge.s32.totalorder %s42, 1
      %s44 = scalar_select %p43, 0, %s42
      %s45 = ssub.s32 %s25, %s44
      %p46 = scmp.eq.s32.totalorder %s45, 0
      %s48 = sadd.s32 %s47, 1
      %s49 = scalar_select %p46, %s47, %s48
      %p52 = pneg %p46
      %p53 = scmp.eq.s32.totalorder %s18, 2
      %p54 = por %p52, %p53
      %p55 = scmp.ne.s32.totalorder %s47, %s50
      %p56 = scmp.eq.s32.totalorder %s18, 0
      %p57 = por %p55, %p56
      %p58 = scmp.ne.s32.totalorder %s47, %s50
      %p59 = scmp.eq.s32.totalorder %s23, 2
      %p60 = por %p58, %p59
      %p61 = scmp.ne.s32.totalorder %s50, %s51
      %p62 = scmp.eq.s32.totalorder %s23, 0
      %p63 = por %p61, %p62
      %p64 = scmp.ne.s32.totalorder %s50, %s51
      %p65 = scmp.eq.s32.totalorder %s24, 2
      %p66 = por %p64, %p65
      %p68 = scmp.ne.s32.totalorder %s51, %s67
      %p69 = scmp.eq.s32.totalorder %s24, 0
      %p70 = por %p68, %p69
      %s71 = ssub.s32 %s27, %s36
      %p72 = scmp.eq.s32.totalorder %s71, 0
      %s74 = sadd.s32 %s73, 1
      %s75 = scalar_select %p72, %s73, %s74
      %p78 = pneg %p72
      %p79 = scmp.eq.s32.totalorder %s18, 2
      %p80 = por %p78, %p79
      %p81 = scmp.ne.s32.totalorder %s73, %s76
      %p82 = scmp.eq.s32.totalorder %s18, 0
      %p83 = por %p81, %p82
      %p84 = scmp.ne.s32.totalorder %s73, %s76
      %p85 = scmp.eq.s32.totalorder %s23, 2
      %p86 = por %p84, %p85
      %p87 = scmp.ne.s32.totalorder %s76, %s77
      %p88 = scmp.eq.s32.totalorder %s23, 0
      %p89 = por %p87, %p88
      %p90 = scmp.ne.s32.totalorder %s76, %s77
      %p91 = scmp.eq.s32.totalorder %s24, 2
      %p92 = por %p90, %p91
      %p94 = scmp.ne.s32.totalorder %s77, %s93
      %p95 = scmp.eq.s32.totalorder %s24, 0
      %p96 = por %p94, %p95
      %s97 = sadd.s32 %s27, 3
      %s98 = sadd.s32 %s36, 3
      %s99 = ssub.s32 %s97, %s98
      %p100 = scmp.eq.s32.totalorder %s99, 0
      %s102 = sadd.s32 %s101, 1
      %s103 = scalar_select %p100, %s101, %s102
      %p106 = pneg %p100
      %p107 = scmp.eq.s32.totalorder %s18, 2
      %p108 = por %p106, %p107
      %p109 = scmp.ne.s32.totalorder %s101, %s104
      %p110 = scmp.eq.s32.totalorder %s18, 0
      %p111 = por %p109, %p110
      %p112 = scmp.ne.s32.totalorder %s101, %s104
      %p113 = scmp.eq.s32.totalorder %s23, 2
      %p114 = por %p112, %p113
      %p115 = scmp.ne.s32.totalorder %s104, %s105
      %p116 = scmp.eq.s32.totalorder %s23, 0
      %p117 = por %p115, %p116
      %p118 = scmp.ne.s32.totalorder %s104, %s105
      %p119 = scmp.eq.s32.totalorder %s24, 2
      %p120 = por %p118, %p119
      %p122 = scmp.ne.s32.totalorder %s105, %s121
      %p123 = scmp.eq.s32.totalorder %s24, 0
      %p124 = por %p122, %p123
      %s125 = ssub.s32 %s27, %s36
      %s126 = ssub.s32 %s26, %s40
      %s127 = sor.u32 %s125, %s126
      %p128 = scmp.eq.s32.totalorder %s127, 0
      %s130 = sadd.s32 %s129, 1
      %s131 = scalar_select %p128, %s129, %s130
      %p134 = pneg %p128
      %p135 = scmp.eq.s32.totalorder %s18, 2
      %p136 = por %p134, %p135
      %p137 = scmp.ne.s32.totalorder %s129, %s132
      %p138 = scmp.eq.s32.totalorder %s18, 0
      %p139 = por %p137, %p138
      %p140 = scmp.ne.s32.totalorder %s129, %s132
      %p141 = scmp.eq.s32.totalorder %s23, 2
      %p142 = por %p140, %p141
      %p143 = scmp.ne.s32.totalorder %s132, %s133
      %p144 = scmp.eq.s32.totalorder %s23, 0
      %p145 = por %p143, %p144
      %p146 = scmp.ne.s32.totalorder %s132, %s133
      %p147 = scmp.eq.s32.totalorder %s24, 2
      %p148 = por %p146, %p147
      %p150 = scmp.ne.s32.totalorder %s133, %s149
      %p151 = scmp.eq.s32.totalorder %s24, 0
      %p152 = por %p150, %p151
      %s153 = ssub.s32 %s25, %s44
      %s154 = ssub.s32 %s26, %s40
      %s155 = sor.u32 %s153, %s154
      %p156 = scmp.eq.s32.totalorder %s155, 0
      %s158 = sadd.s32 %s157, 1
      %s159 = scalar_select %p156, %s157, %s158
      %p162 = pneg %p156
      %p163 = scmp.eq.s32.totalorder %s18, 2
      %p164 = por %p162, %p163
      %p165 = scmp.ne.s32.totalorder %s157, %s160
      %p166 = scmp.eq.s32.totalorder %s18, 0
      %p167 = por %p165, %p166
      %p168 = scmp.ne.s32.totalorder %s157, %s160
      %p169 = scmp.eq.s32.totalorder %s23, 2
      %p170 = por %p168, %p169
      %p171 = scmp.ne.s32.totalorder %s160, %s161
      %p172 = scmp.eq.s32.totalorder %s23, 0
      %p173 = por %p171, %p172
      %p174 = scmp.ne.s32.totalorder %s160, %s161
      %p175 = scmp.eq.s32.totalorder %s24, 2
      %p176 = por %p174, %p175
      %p178 = scmp.ne.s32.totalorder %s161, %s177
      %p179 = scmp.eq.s32.totalorder %s24, 0
      %p180 = por %p178, %p179
      %p181 = scmp.le.s32.totalorder 1, %s18
      %p182 = scmp.lt.s32.totalorder %s18, 4
      %p183 = pnand %p181, %p182
      %p184 = pneg %p183
      // Predicated region
      $region9: #{tpu_custom_call.1} parent=5 // pred_check
        _
      $region10: #{tpu_custom_call.1} parent=5 // pred_check_branch
        %186 = sbr.rel (%p183) target = $region12
      $region11: #{tpu_custom_call.1} parent=5 // pred_region
        %s187 = ssub.s32 %s18, 1
        // Predicated region
        $region13: #{tpu_custom_call.1} parent=11 // pred_check
          %p188 = pneg %p63
        $region14: #{tpu_custom_call.1} parent=11 // pred_check_branch
          %190 = sbr.rel (%p188) target = $region16
        $region15: #{tpu_custom_call.1} parent=11 // pred_region
          %s192 = ssub.s32 128, 128
          %193 = vsyncadd [#allocation4], %s192
          %s194 = smul.addr %s28, 128
          %s195 = scalar_lea.hbm %s0, %s194
          %s197 = sshll.u32 [#allocation3], 4
          %s198 = int_to_ptr.vmem [resolvable:$true] %s197
          %200 = dma.hbm_to_vmem [thread:$0]  %s195, 128, %s198, [#allocation4]
        $region16: #{tpu_custom_call.1} parent=11 // pred_fallthru
          _
      $region12: #{tpu_custom_call.1} parent=5 // pred_fallthru
        _
      %p201 = scmp.lt.s32.totalorder %s18, 3
      // Predicated region
      $region17: #{tpu_custom_call.1} parent=5 // pred_check
        %p202 = pneg %p201
      $region18: #{tpu_custom_call.1} parent=5 // pred_check_branch
        %204 = sbr.rel (%p202) target = $region20
      $region19: #{tpu_custom_call.1} parent=5 // pred_region
        // Predicated region
        $region21: #{tpu_custom_call.1} parent=19 // pred_check
          %p205 = pneg %p83
        $region22: #{tpu_custom_call.1} parent=19 // pred_check_branch
          %207 = sbr.rel (%p205) target = $region24
        $region23: #{tpu_custom_call.1} parent=19 // pred_region
          %s208 = sand.u32 %s18, 1
          %s209 = scalar_lea.sflag [#allocation7], %s208
          %s210 = sand.u32 %s73, 1
          %s211 = smul.addr %s210, 128
          %s212 = scalar_lea.vmem [#allocation6], %s211
          %s214 = ssub.s32 2048, 2048
          %215 = vsyncadd %s209, %s214
          %s216 = smul.addr %s27, 128
          %s217 = scalar_lea.hbm %s1, %s216
          %s218 = sshll.u32 %s212, 4
          %s219 = int_to_ptr.vmem [resolvable:$true] %s218
          %224 = dma.hbm_to_vmem [thread:$0]  %s217, 2048, %s219, %s209, 768, 128, 8
        $region24: #{tpu_custom_call.1} parent=19 // pred_fallthru
          _
        // Predicated region
        $region25: #{tpu_custom_call.1} parent=19 // pred_check
          %p225 = pneg %p111
        $region26: #{tpu_custom_call.1} parent=19 // pred_check_branch
          %227 = sbr.rel (%p225) target = $region28
        $region27: #{tpu_custom_call.1} parent=19 // pred_region
          %s228 = sand.u32 %s18, 1
          %s229 = scalar_lea.sflag [#allocation7], %s228
          %s230 = sand.u32 %s101, 1
          %s231 = smul.addr %s230, 128
          %s232 = scalar_lea.vmem [#allocation8], %s231
          %s233 = sadd.s32 %s27, 3
          %s235 = ssub.s32 2048, 2048
          %236 = vsyncadd %s229, %s235
          %s237 = smul.addr %s233, 128
          %s238 = scalar_lea.hbm %s2, %s237
          %s239 = sshll.u32 %s232, 4
          %s240 = int_to_ptr.vmem [resolvable:$true] %s239
          %245 = dma.hbm_to_vmem [thread:$0]  %s238, 2048, %s240, %s229, 768, 128, 8
        $region28: #{tpu_custom_call.1} parent=19 // pred_fallthru
          _
        // Predicated region
        $region29: #{tpu_custom_call.1} parent=19 // pred_check
          %p246 = pneg %p139
        $region30: #{tpu_custom_call.1} parent=19 // pred_check_branch
          %248 = sbr.rel (%p246) target = $region32
        $region31: #{tpu_custom_call.1} parent=19 // pred_region
          %s249 = sand.u32 %s129, 1
          %s250 = scalar_lea.sflag [#allocation10], %s249
          %s251 = sand.u32 %s129, 1
          %s252 = smul.addr %s251, 128
          %s253 = scalar_lea.vmem [#allocation9], %s252
          %s254 = smul.u32 16, %s27
          %s256 = ssub.s32 2048, 2048
          %257 = vsyncadd %s250, %s256
          %s258 = sadd.s32 %s26, %s254
          %s259 = smul.addr %s258, 128
          %s260 = scalar_lea.hbm %s3, %s259
          %s261 = sshll.u32 %s253, 4
          %s262 = int_to_ptr.vmem [resolvable:$true] %s261
          %267 = dma.hbm_to_vmem [thread:$0]  %s260, 2048, %s262, %s250, 128, 128, 8
        $region32: #{tpu_custom_call.1} parent=19 // pred_fallthru
          _
      $region20: #{tpu_custom_call.1} parent=5 // pred_fallthru
        _
      %p268 = scmp.le.s32.totalorder 1, %s18
      %p269 = scmp.lt.s32.totalorder %s18, 4
      %p270 = pnand %p268, %p269
      %p271 = pneg %p270
      // Predicated region
      $region33: #{tpu_custom_call.1} parent=5 // pred_check
        _
      $region34: #{tpu_custom_call.1} parent=5 // pred_check_branch
        %273 = sbr.rel (%p270) target = $region36
      $region35: #{tpu_custom_call.1} parent=5 // pred_region
        %s274 = ssub.s32 %s18, 1
        // Predicated region
        $region37: #{tpu_custom_call.1} parent=35 // pred_check
          %p275 = pneg %p63
        $region38: #{tpu_custom_call.1} parent=35 // pred_check_branch
          %277 = sbr.rel (%p275) target = $region40
        $region39: #{tpu_custom_call.1} parent=35 // pred_region
          %278 = dma.done [#allocation4], 128
        $region40: #{tpu_custom_call.1} parent=35 // pred_fallthru
          _
        %s279 = sand.u32 %s23, 1
        %s280 = scalar_lea.sflag [#allocation7], %s279
        %s281 = sand.u32 %s76, 1
        %s282 = smul.addr %s281, 128
        %s283 = scalar_lea.vmem [#allocation6], %s282
        // Predicated region
        $region41: #{tpu_custom_call.1} parent=35 // pred_check
          %p284 = pneg %p89
        $region42: #{tpu_custom_call.1} parent=35 // pred_check_branch
          %286 = sbr.rel (%p284) target = $region44
        $region43: #{tpu_custom_call.1} parent=35 // pred_region
          %287 = dma.done %s280, 2048
        $region44: #{tpu_custom_call.1} parent=35 // pred_fallthru
          _
        %s288 = sand.u32 %s23, 1
        %s289 = scalar_lea.sflag [#allocation7], %s288
        %s290 = sand.u32 %s104, 1
        %s291 = smul.addr %s290, 128
        %s292 = scalar_lea.vmem [#allocation8], %s291
        // Predicated region
        $region45: #{tpu_custom_call.1} parent=35 // pred_check
          %p293 = pneg %p117
        $region46: #{tpu_custom_call.1} parent=35 // pred_check_branch
          %295 = sbr.rel (%p293) target = $region48
        $region47: #{tpu_custom_call.1} parent=35 // pred_region
          %296 = dma.done %s289, 2048
        $region48: #{tpu_custom_call.1} parent=35 // pred_fallthru
          _
        %s297 = sand.u32 %s132, 1
        %s298 = scalar_lea.sflag [#allocation10], %s297
        %s299 = sand.u32 %s132, 1
        %s300 = smul.addr %s299, 128
        %s301 = scalar_lea.vmem [#allocation9], %s300
        // Predicated region
        $region49: #{tpu_custom_call.1} parent=35 // pred_check
          %p302 = pneg %p145
        $region50: #{tpu_custom_call.1} parent=35 // pred_check_branch
          %304 = sbr.rel (%p302) target = $region52
        $region51: #{tpu_custom_call.1} parent=35 // pred_region
          %305 = dma.done %s298, 2048
        $region52: #{tpu_custom_call.1} parent=35 // pred_fallthru
          _
        %p306 = pneg %p63
        %p307 = pneg %p60
        %s308 = sand.u32 %s23, 1
        %s309 = scalar_lea.sflag [#allocation7], %s308
        %s310 = sand.u32 %s76, 1
        %s311 = smul.addr %s310, 128
        %s312 = scalar_lea.vmem [#allocation6], %s311
        %p313 = pneg %p89
        %p314 = pneg %p86
        %s315 = sand.u32 %s23, 1
        %s316 = scalar_lea.sflag [#allocation7], %s315
        %s317 = sand.u32 %s104, 1
        %s318 = smul.addr %s317, 128
        %s319 = scalar_lea.vmem [#allocation8], %s318
        %p320 = pneg %p117
        %p321 = pneg %p114
        %s322 = sand.u32 %s132, 1
        %s323 = scalar_lea.sflag [#allocation10], %s322
        %s324 = sand.u32 %s132, 1
        %s325 = smul.addr %s324, 128
        %s326 = scalar_lea.vmem [#allocation9], %s325
        %p327 = pneg %p145
        %p328 = pneg %p142
        %p329 = pneg %p173
        %p330 = pneg %p170
        %s331 = sadd.s32 %s30, 3
        %s332 = smul.u32 16, %s30
        %p333 = scmp.eq.s32.totalorder %s30, 0
        // Predicated region
        $region53: #{tpu_custom_call.1} parent=35 // pred_check
          %p334 = pneg %p333
        $region54: #{tpu_custom_call.1} parent=35 // pred_check_branch
          %336 = sbr.rel (%p334) target = $region56
        $region55: #{tpu_custom_call.1} parent=35 // pred_region
          %337 = vst [vmem:[#allocation2] sm:$0xff] 0.0
        $region56: #{tpu_custom_call.1} parent=35 // pred_fallthru
          _
        %v338 = vld [vmem:[#allocation3] sm:$0xff]
        %v339 = vld [vmem:[%s283] sm:$0xff]
        %v340 = vld [vmem:[%s283 + $0x8] sm:$0xff]
        %v341 = vld [vmem:[%s283 + $0x10] sm:$0xff]
        %v342 = vld [vmem:[%s283 + $0x18] sm:$0xff]
        %v343 = vld [vmem:[%s283 + $0x20] sm:$0xff]
        %v344 = vld [vmem:[%s283 + $0x28] sm:$0xff]
        %v345 = vld [vmem:[%s283 + $0x30] sm:$0xff]
        %v346 = vld [vmem:[%s283 + $0x38] sm:$0xff]
        %v347 = vld [vmem:[%s283 + $0x40] sm:$0xff]
        %v348 = vld [vmem:[%s283 + $0x48] sm:$0xff]
        %v349 = vld [vmem:[%s283 + $0x50] sm:$0xff]
        %v350 = vld [vmem:[%s283 + $0x58] sm:$0xff]
        %v351 = vld [vmem:[%s283 + $0x60] sm:$0xff]
        %v352 = vld [vmem:[%s283 + $0x68] sm:$0xff]
        %v353 = vld [vmem:[%s283 + $0x70] sm:$0xff]
        %v354 = vld [vmem:[%s283 + $0x78] sm:$0xff]
        %355 = vmatprep.subr.mxu0 0.0
        %356 = vmatpush1.msra.mxu0 %v339
        %357 = vmatprep.subr.mxu0 0.0
        %358 = vmatpush1.msra.mxu0 %v340
        %359 = vmatprep.subr.mxu0 0.0
        %360 = vmatpush1.msra.mxu0 %v341
        %361 = vmatprep.subr.mxu0 0.0
        %362 = vmatpush1.msra.mxu0 %v342
        %363 = vmatprep.subr.mxu0 0.0
        %364 = vmatpush1.msra.mxu0 %v343
        %365 = vmatprep.subr.mxu0 0.0
        %366 = vmatpush1.msra.mxu0 %v344
        %367 = vmatprep.subr.mxu0 0.0
        %368 = vmatpush1.msra.mxu0 %v345
        %369 = vmatprep.subr.mxu0 0.0
        %370 = vmatpush1.msra.mxu0 %v346
        %371 = vmatprep.subr.mxu0 0.0
        %372 = vmatpush1.msra.mxu0 %v347
        %373 = vmatprep.subr.mxu0 0.0
        %374 = vmatpush1.msra.mxu0 %v348
        %375 = vmatprep.subr.mxu0 0.0
        %376 = vmatpush1.msra.mxu0 %v349
        %377 = vmatprep.subr.mxu0 0.0
        %378 = vmatpush1.msra.mxu0 %v350
        %379 = vmatprep.subr.mxu0 0.0
        %380 = vmatpush1.msra.mxu0 %v351
        %381 = vmatprep.subr.mxu0 0.0
        %382 = vmatpush1.msra.mxu0 %v352
        %383 = vmatprep.subr.mxu0 0.0
        %384 = vmatpush1.msra.mxu0 %v353
        %385 = vmatprep.subr.mxu0 0.0
        %386 = vmatpush1.msra.mxu0 %v354
        %387 = vmatprep.subr.mxu0 0.0
        %388 = vmatpush1.msra.mxu0 0.0
        %389 = vmatprep.subr.mxu0 0.0
        %390 = vmatpush1.msra.mxu0 0.0
        %391 = vmatprep.subr.mxu0 0.0
        %392 = vmatpush1.msra.mxu0 0.0
        %393 = vmatprep.subr.mxu0 0.0
        %394 = vmatpush1.msra.mxu0 0.0
        %395 = vmatprep.subr.mxu0 0.0
        %396 = vmatpush1.msra.mxu0 0.0
        %397 = vmatprep.subr.mxu0 0.0
        %398 = vmatpush1.msra.mxu0 0.0
        %399 = vmatprep.subr.mxu0 0.0
        %400 = vmatpush1.msra.mxu0 0.0
        %401 = vmatprep.subr.mxu0 0.0
        %402 = vmatpush1.msra.mxu0 0.0
        %403 = vmatprep.subr.mxu0 0.0
        %404 = vmatpush1.msra.mxu0 0.0
        %405 = vmatprep.subr.mxu0 0.0
        %406 = vmatpush1.msra.mxu0 0.0
        %407 = vmatprep.subr.mxu0 0.0
        %408 = vmatpush1.msra.mxu0 0.0
        %409 = vmatprep.subr.mxu0 0.0
        %410 = vmatpush1.msra.mxu0 0.0
        %411 = vmatprep.subr.mxu0 0.0
        %412 = vmatpush1.msra.mxu0 0.0
        %413 = vmatprep.subr.mxu0 0.0
        %414 = vmatpush1.msra.mxu0 0.0
        %415 = vmatprep.subr.mxu0 0.0
        %416 = vmatpush1.msra.mxu0 0.0
        %417 = vmatprep.subr.mxu0 0.0
        %418 = vmatpush1.msra.mxu0 0.0
        %419 = vmatprep.mubr.f32.mxu0 0.0
        %420 = vmatmul.mubr.f32.gmra.mrb[0].mxu0 %v338
        %v421 = vpop.f32.mrb[0].mxu0
        %v422 = vadd.f32 0.0, %v421
        %v423 = vpop.f32.mrb[0].mxu0
        %424 = vdwg.mxu0
        %v425 = vld [vmem:[%s292] sm:$0xff]
        %v426 = vld [vmem:[%s292 + $0x8] sm:$0xff]
        %v427 = vld [vmem:[%s292 + $0x10] sm:$0xff]
        %v428 = vld [vmem:[%s292 + $0x18] sm:$0xff]
        %v429 = vld [vmem:[%s292 + $0x20] sm:$0xff]
        %v430 = vld [vmem:[%s292 + $0x28] sm:$0xff]
        %v431 = vld [vmem:[%s292 + $0x30] sm:$0xff]
        %v432 = vld [vmem:[%s292 + $0x38] sm:$0xff]
        %v433 = vld [vmem:[%s292 + $0x40] sm:$0xff]
        %v434 = vld [vmem:[%s292 + $0x48] sm:$0xff]
        %v435 = vld [vmem:[%s292 + $0x50] sm:$0xff]
        %v436 = vld [vmem:[%s292 + $0x58] sm:$0xff]
        %v437 = vld [vmem:[%s292 + $0x60] sm:$0xff]
        %v438 = vld [vmem:[%s292 + $0x68] sm:$0xff]
        %v439 = vld [vmem:[%s292 + $0x70] sm:$0xff]
        %v440 = vld [vmem:[%s292 + $0x78] sm:$0xff]
        %441 = vmatprep.subr.mxu0 0.0
        %442 = vmatpush1.msra.mxu0 %v425
        %443 = vmatprep.subr.mxu0 0.0
        %444 = vmatpush1.msra.mxu0 %v426
        %445 = vmatprep.subr.mxu0 0.0
        %446 = vmatpush1.msra.mxu0 %v427
        %447 = vmatprep.subr.mxu0 0.0
        %448 = vmatpush1.msra.mxu0 %v428
        %449 = vmatprep.subr.mxu0 0.0
        %450 = vmatpush1.msra.mxu0 %v429
        %451 = vmatprep.subr.mxu0 0.0
        %452 = vmatpush1.msra.mxu0 %v430
        %453 = vmatprep.subr.mxu0 0.0
        %454 = vmatpush1.msra.mxu0 %v431
        %455 = vmatprep.subr.mxu0 0.0
        %456 = vmatpush1.msra.mxu0 %v432
        %457 = vmatprep.subr.mxu0 0.0
        %458 = vmatpush1.msra.mxu0 %v433
        %459 = vmatprep.subr.mxu0 0.0
        %460 = vmatpush1.msra.mxu0 %v434
        %461 = vmatprep.subr.mxu0 0.0
        %462 = vmatpush1.msra.mxu0 %v435
        %463 = vmatprep.subr.mxu0 0.0
        %464 = vmatpush1.msra.mxu0 %v436
        %465 = vmatprep.subr.mxu0 0.0
        %466 = vmatpush1.msra.mxu0 %v437
        %467 = vmatprep.subr.mxu0 0.0
        %468 = vmatpush1.msra.mxu0 %v438
        %469 = vmatprep.subr.mxu0 0.0
        %470 = vmatpush1.msra.mxu0 %v439
        %471 = vmatprep.subr.mxu0 0.0
        %472 = vmatpush1.msra.mxu0 %v440
        %473 = vmatprep.subr.mxu0 0.0
        %474 = vmatpush1.msra.mxu0 0.0
        %475 = vmatprep.subr.mxu0 0.0
        %476 = vmatpush1.msra.mxu0 0.0
        %477 = vmatprep.subr.mxu0 0.0
        %478 = vmatpush1.msra.mxu0 0.0
        %479 = vmatprep.subr.mxu0 0.0
        %480 = vmatpush1.msra.mxu0 0.0
        %481 = vmatprep.subr.mxu0 0.0
        %482 = vmatpush1.msra.mxu0 0.0
        %483 = vmatprep.subr.mxu0 0.0
        %484 = vmatpush1.msra.mxu0 0.0
        %485 = vmatprep.subr.mxu0 0.0
        %486 = vmatpush1.msra.mxu0 0.0
        %487 = vmatprep.subr.mxu0 0.0
        %488 = vmatpush1.msra.mxu0 0.0
        %489 = vmatprep.subr.mxu0 0.0
        %490 = vmatpush1.msra.mxu0 0.0
        %491 = vmatprep.subr.mxu0 0.0
        %492 = vmatpush1.msra.mxu0 0.0
        %493 = vmatprep.subr.mxu0 0.0
        %494 = vmatpush1.msra.mxu0 0.0
        %495 = vmatprep.subr.mxu0 0.0
        %496 = vmatpush1.msra.mxu0 0.0
        %497 = vmatprep.subr.mxu0 0.0
        %498 = vmatpush1.msra.mxu0 0.0
        %499 = vmatprep.subr.mxu0 0.0
        %500 = vmatpush1.msra.mxu0 0.0
        %501 = vmatprep.subr.mxu0 0.0
        %502 = vmatpush1.msra.mxu0 0.0
        %503 = vmatprep.subr.mxu0 0.0
        %504 = vmatpush1.msra.mxu0 0.0
        %505 = vmatprep.mubr.f32.mxu0 0.0
        %506 = vmatmul.mubr.f32.gmra.mrb[0].mxu0 %v338
        %v507 = vpop.f32.mrb[0].mxu0
        %v508 = vadd.f32 0.0, %v507
        %v509 = vpop.f32.mrb[0].mxu0
        %510 = vdwg.mxu0
        %v511 = vsub.f32 0.0, %v422
        %v512 = vmul.f32 %v511, 1.442695
        %v513 = vpow.pop %v512
        %v514 = vadd.f32 %v513, 1.0
        %v515 = vrcp.pop %v514
        %v516 = vmul.f32 %v422, %v515
        %v517 = vmul.f32 %v516, %v508
        %v518 = vld [vmem:[#allocation2] sm:$0xff]
        %v519 = vld [vmem:[%s301] sm:$0xff]
        %v520 = vld [vmem:[%s301 + $0x8] sm:$0xff]
        %v521 = vld [vmem:[%s301 + $0x10] sm:$0xff]
        %v522 = vld [vmem:[%s301 + $0x18] sm:$0xff]
        %v523 = vld [vmem:[%s301 + $0x20] sm:$0xff]
        %v524 = vld [vmem:[%s301 + $0x28] sm:$0xff]
        %v525 = vld [vmem:[%s301 + $0x30] sm:$0xff]
        %v526 = vld [vmem:[%s301 + $0x38] sm:$0xff]
        %v527 = vld [vmem:[%s301 + $0x40] sm:$0xff]
        %v528 = vld [vmem:[%s301 + $0x48] sm:$0xff]
        %v529 = vld [vmem:[%s301 + $0x50] sm:$0xff]
        %v530 = vld [vmem:[%s301 + $0x58] sm:$0xff]
        %v531 = vld [vmem:[%s301 + $0x60] sm:$0xff]
        %v532 = vld [vmem:[%s301 + $0x68] sm:$0xff]
        %v533 = vld [vmem:[%s301 + $0x70] sm:$0xff]
        %v534 = vld [vmem:[%s301 + $0x78] sm:$0xff]
        %535 = vmatprep.subr.mxu0 0.0
        %536 = vmatpush1.msra.mxu0 %v519
        %537 = vmatprep.subr.mxu0 0.0
        %538 = vmatpush1.msra.mxu0 %v520
        %539 = vmatprep.subr.mxu0 0.0
        %540 = vmatpush1.msra.mxu0 %v521
        %541 = vmatprep.subr.mxu0 0.0
        %542 = vmatpush1.msra.mxu0 %v522
        %543 = vmatprep.subr.mxu0 0.0
        %544 = vmatpush1.msra.mxu0 %v523
        %545 = vmatprep.subr.mxu0 0.0
        %546 = vmatpush1.msra.mxu0 %v524
        %547 = vmatprep.subr.mxu0 0.0
        %548 = vmatpush1.msra.mxu0 %v525
        %549 = vmatprep.subr.mxu0 0.0
        %550 = vmatpush1.msra.mxu0 %v526
        %551 = vmatprep.subr.mxu0 0.0
        %552 = vmatpush1.msra.mxu0 %v527
        %553 = vmatprep.subr.mxu0 0.0
        %554 = vmatpush1.msra.mxu0 %v528
        %555 = vmatprep.subr.mxu0 0.0
        %556 = vmatpush1.msra.mxu0 %v529
        %557 = vmatprep.subr.mxu0 0.0
        %558 = vmatpush1.msra.mxu0 %v530
        %559 = vmatprep.subr.mxu0 0.0
        %560 = vmatpush1.msra.mxu0 %v531
        %561 = vmatprep.subr.mxu0 0.0
        %562 = vmatpush1.msra.mxu0 %v532
        %563 = vmatprep.subr.mxu0 0.0
        %564 = vmatpush1.msra.mxu0 %v533
        %565 = vmatprep.subr.mxu0 0.0
        %566 = vmatpush1.msra.mxu0 %v534
        %567 = vmatprep.subr.mxu0 0.0
        %568 = vmatpush1.msra.mxu0 0.0
        %569 = vmatprep.subr.mxu0 0.0
        %570 = vmatpush1.msra.mxu0 0.0
        %571 = vmatprep.subr.mxu0 0.0
        %572 = vmatpush1.msra.mxu0 0.0
        %573 = vmatprep.subr.mxu0 0.0
        %574 = vmatpush1.msra.mxu0 0.0
        %575 = vmatprep.subr.mxu0 0.0
        %576 = vmatpush1.msra.mxu0 0.0
        %577 = vmatprep.subr.mxu0 0.0
        %578 = vmatpush1.msra.mxu0 0.0
        %579 = vmatprep.subr.mxu0 0.0
        %580 = vmatpush1.msra.mxu0 0.0
        %581 = vmatprep.subr.mxu0 0.0
        %582 = vmatpush1.msra.mxu0 0.0
        %583 = vmatprep.subr.mxu0 0.0
        %584 = vmatpush1.msra.mxu0 0.0
        %585 = vmatprep.subr.mxu0 0.0
        %586 = vmatpush1.msra.mxu0 0.0
        %587 = vmatprep.subr.mxu0 0.0
        %588 = vmatpush1.msra.mxu0 0.0
        %589 = vmatprep.subr.mxu0 0.0
        %590 = vmatpush1.msra.mxu0 0.0
        %591 = vmatprep.subr.mxu0 0.0
        %592 = vmatpush1.msra.mxu0 0.0
        %593 = vmatprep.subr.mxu0 0.0
        %594 = vmatpush1.msra.mxu0 0.0
        %595 = vmatprep.subr.mxu0 0.0
        %596 = vmatpush1.msra.mxu0 0.0
        %597 = vmatprep.subr.mxu0 0.0
        %598 = vmatpush1.msra.mxu0 0.0
        %599 = vmatprep.mubr.f32.mxu0 0.0
        %600 = vmatmul.mubr.f32.gmra.mrb[0].mxu0 %v517
        %v601 = vpop.f32.mrb[0].mxu0
        %v602 = vadd.f32 0.0, %v601
        %v603 = vpop.f32.mrb[0].mxu0
        %604 = vdwg.mxu0
        %v605 = vadd.f32 %v518, %v602
        %606 = vst [vmem:[#allocation2] sm:$0xff] %v605
        %p607 = scmp.eq.s32.totalorder %s30, 2
        // Predicated region
        $region57: #{tpu_custom_call.1} parent=35 // pred_check
          %p608 = pneg %p607
        $region58: #{tpu_custom_call.1} parent=35 // pred_check_branch
          %610 = sbr.rel (%p608) target = $region60
        $region59: #{tpu_custom_call.1} parent=35 // pred_region
          %v611 = vld [vmem:[#allocation2] sm:$0xff]
          %612 = vst [vmem:[#allocation11] sm:$0xff] %v611
        $region60: #{tpu_custom_call.1} parent=35 // pred_fallthru
          _
        // Predicated region
        $region61: #{tpu_custom_call.1} parent=35 // pred_check
          %p613 = pneg %p170
        $region62: #{tpu_custom_call.1} parent=35 // pred_check_branch
          %615 = sbr.rel (%p613) target = $region64
        $region63: #{tpu_custom_call.1} parent=35 // pred_region
          %s617 = ssub.s32 128, 128
          %618 = vsyncadd [#allocation5], %s617
          %s619 = sadd.s32 %s29, %s28
          %s620 = smul.addr %s619, 128
          %s621 = scalar_lea.hbm %s4, %s620
          %s623 = sshll.u32 [#allocation11], 4
          %s624 = int_to_ptr.vmem [resolvable:$true] %s623
          %626 = dma.vmem_to_hbm [thread:$0]  %s624, 128, %s621, [#allocation5]
        $region64: #{tpu_custom_call.1} parent=35 // pred_fallthru
          _
        // Predicated region
        $region65: #{tpu_custom_call.1} parent=35 // pred_check
          %p627 = pneg %p170
        $region66: #{tpu_custom_call.1} parent=35 // pred_check_branch
          %629 = sbr.rel (%p627) target = $region68
        $region67: #{tpu_custom_call.1} parent=35 // pred_region
          %630 = dma.done [#allocation5], 128
        $region68: #{tpu_custom_call.1} parent=35 // pred_fallthru
          _
      $region36: #{tpu_custom_call.1} parent=5 // pred_fallthru
        _
      %p631 = scmp.le.s32.totalorder 2, %s18
      // Predicated region
      $region69: #{tpu_custom_call.1} parent=5 // pred_check
        %p632 = pneg %p631
      $region70: #{tpu_custom_call.1} parent=5 // pred_check_branch
        %634 = sbr.rel (%p632) target = $region72
      $region71: #{tpu_custom_call.1} parent=5 // pred_region
        %s635 = ssub.s32 %s18, 2
      $region72: #{tpu_custom_call.1} parent=5 // pred_fallthru
        _
    $region6: #{tpu_custom_call.1} parent=1 // loop_footer
      %s22 = sadd.s32 1, %s18
    $region7: #{tpu_custom_call.1} parent=1 // loop_footer_branch
      %17 = sbr.rel target = $region3
    $region8: #{tpu_custom_call.1} parent=1 // loop_exit
      _
    %636 = vsyncpa [#allocation4], 1
    %s637 = scalar_lea.sflag [#allocation4], 1
    %638 = vsyncpa %s637, 1
    %639 = vsyncpa [#allocation7], 1
    %s640 = scalar_lea.sflag [#allocation7], 1
    %641 = vsyncpa %s640, 1
    %642 = vsyncpa [#allocation10], 1
    %s643 = scalar_lea.sflag [#allocation10], 1
    %644 = vsyncpa %s643, 1
    %645 = vsyncpa [#allocation5], 1
    %s646 = scalar_lea.sflag [#allocation5], 1
    %647 = vsyncpa %s646, 1

</llo_original>
